<compile_context>
chip_gen: v6e
topology: v6e:2x2x1
jax: 0.10.0
libtpu: 0.0.40
codegen_flags: <defaults>
</compile_context>

<pallas_src>
import functools

import jax
import jax.numpy as jnp
from jax.experimental import pallas as pl
from jax.experimental.pallas import tpu as pltpu


def _round_up(x, m):
    return ((x + m - 1) // m) * m


def _cdiv(a, b):
    return (a + b - 1) // b


def _physical_vmem_bytes():
    try:
        return int(pltpu.get_tpu_info().vmem_capacity_bytes)
    except Exception:
        return 64 << 20  # conservative: v7x per-TensorCore VMEM


def _pick_tile(dim_p, req):
    """Largest multiple of 128 that divides dim_p (itself a multiple of 128)
    and is <= max(req, 128).  Guarantees exact blocking of the padded dim."""
    m = dim_p // 128
    req_m = max(req // 128, 1)
    best = 1
    for d in range(1, m + 1):
        if m % d == 0 and d <= req_m:
            best = d
    return 128 * best


# ---------------------------------------------------------------------------
# Kernel bodies
# ---------------------------------------------------------------------------
def _expert_kernel_resident(x_ref, w1_ref, b1_ref, w2_ref, b2_ref, o_ref):
    # n_k == 1: full hidden dim in one shot; no accumulator scratch, no
    # zero-fill pass, direct lane-dense output store.
    h = jnp.dot(x_ref[...], w1_ref[...], preferred_element_type=jnp.float32)
    h = jnp.maximum(h + b1_ref[...], 0.0)              # f32 bias+ReLU (v5e safe)
    acc = jnp.dot(h.astype(w2_ref.dtype), w2_ref[...],
                  preferred_element_type=jnp.float32)
    o_ref[...] = (acc + b2_ref[...]).astype(o_ref.dtype)


def _expert_kernel_tiled(x_ref, w1_ref, b1_ref, w2_ref, b2_ref, o_ref, acc_ref):
    # hidden dim tiled along grid axis 2 ("arbitrary"); f32 accumulator.
    k = pl.program_id(2)
    nk = pl.num_programs(2)

    h = jnp.dot(x_ref[...], w1_ref[...], preferred_element_type=jnp.float32)
    h = jnp.maximum(h + b1_ref[...], 0.0)               # exact per-hidden-col
    p = jnp.dot(h.astype(w2_ref.dtype), w2_ref[...],
                preferred_element_type=jnp.float32)

    @pl.when(k == 0)
    def _():
        acc_ref[...] = p                                 # assign, no zero-fill

    @pl.when(jnp.logical_and(k > 0, k < nk - 1))
    def _():
        acc_ref[...] += p

    @pl.when(k == nk - 1)
    def _():
        # fuse last partial + bias into the output store (skips one acc pass)
        o_ref[...] = (acc_ref[...] + p + b2_ref[...]).astype(o_ref.dtype)


# ---------------------------------------------------------------------------
# One-time parameter preparation (OFF the per-call path)
# ---------------------------------------------------------------------------
def prepare_expert_params(w1_t, b1, w2_t, b2, compute_dtype=jnp.bfloat16):
    """Pad every feature dim to a multiple of 128 (exact: zero rows/cols
    contribute nothing) and cast weights to the MXU compute dtype ONCE.

    w1_t: [input_dim, hidden_dim]   (transpose of torch Linear weight)
    w2_t: [hidden_dim, output_dim]
    Returns (w1_p, b1_p, w2_p, b2_p, output_dim).
    """
    d_in, d_hid = w1_t.shape
    d_out = w2_t.shape[1]
    d_in_p, d_hid_p, d_out_p = (_round_up(d, 128) for d in (d_in, d_hid, d_out))
    cdt = compute_dtype

    def pad_mat(a, r, c):
        a = a if a.dtype == cdt else a.astype(cdt)
        if a.shape == (r, c):           # already aligned: no copy at all
            return a
        return jnp.zeros((r, c), cdt).at[: a.shape[0], : a.shape[1]].set(a)

    def pad_bias(b, n, n_p):
        b = b.astype(jnp.float32).reshape(1, -1)
        if n == n_p:
            return b
        return jnp.zeros((1, n_p), jnp.float32).at[:, :n].set(b)

    w1_p = pad_mat(w1_t, d_in_p, d_hid_p)
    w2_p = pad_mat(w2_t, d_hid_p, d_out_p)
    b1_p = pad_bias(b1, d_hid, d_hid_p)     # biases stay f32 (v5e-safe VPU path)
    b2_p = pad_bias(b2, d_out, d_out_p)
    return w1_p, b1_p, w2_p, b2_p, d_out


# ---------------------------------------------------------------------------
# Forward
# ---------------------------------------------------------------------------
@functools.partial(jax.jit, static_argnames=("d_out", "tm", "th", "tn"))
def expert_forward_padded(x, w1_p, b1_p, w2_p, b2_p, *, d_out,
                          tm=512, th=512, tn=None):
    """Fused expert MLP on pre-padded / pre-cast parameters.

    x: [B, input_dim] (unpadded).  Only x is padded per call.
    """
    B, d_in = x.shape
    d_in_p, d_hid_p = w1_p.shape
    d_out_p = w2_p.shape[1]
    cdt = w1_p.dtype
    out_dtype = x.dtype
    csz = jnp.dtype(cdt).itemsize
    osz = jnp.dtype(out_dtype).itemsize

    # ---- batch tile: balanced (minimal padding), sublane aligned ----------
    sub = 16 if cdt == jnp.bfloat16 else 8
    B_sub = _round_up(B, sub)
    tm_req = max(sub, _round_up(min(tm, B_sub), sub))
    n_i = _cdiv(B_sub, tm_req)
    if n_i == 1 and B_sub >= 2 * sub:
        n_i = 2                      # >=2 batch tiles so v7x's 2 TCs both work
    tm_eff = _round_up(_cdiv(B_sub, n_i), sub)
    n_i = _cdiv(B_sub, tm_eff)
    B_p = n_i * tm_eff

    # ---- VMEM budget (clamped to physical capacity) ------------------------
    vmem_phys = _physical_vmem_bytes()
    vmem_budget = int(vmem_phys * 0.75)

    def vmem_need(tm_, th_, tn_, n_k_, n_j_):
        wbuf_k = 1 if n_k_ == 1 else 2                 # W1/b1 vary along k only
        wbuf_kj = 1 if (n_k_ == 1 and n_j_ == 1) else 2  # W2/b2 vary with k, j
        need = 2 * tm_ * d_in_p * csz                  # x (double-buffered)
        need += wbuf_k * d_in_p * th_ * csz            # W1 slices
        need += wbuf_k * 8 * th_ * 4                   # b1 (sublane-padded, f32)
        need += wbuf_kj * th_ * tn_ * csz              # W2 slices
        need += wbuf_kj * 8 * tn_ * 4                  # b2
        need += 2 * tm_ * tn_ * osz                    # output (double-buffered)
        need += tm_ * th_ * 4 + tm_ * th_ * csz        # h intermediate + cast
        if n_k_ > 1:
            need += tm_ * tn_ * 4                      # f32 accumulator
        return need

    # ---- hidden / output tiling: prefer VMEM-resident weights -------------
    th_eff, n_k = d_hid_p, 1
    tn_eff, n_j = d_out_p, 1
    if tn is not None:
        tn_eff = _pick_tile(d_out_p, tn)
        n_j = d_out_p // tn_eff
    if vmem_need(tm_eff, th_eff, tn_eff, n_k, n_j) > vmem_budget:
        th_eff = _pick_tile(d_hid_p, th)               # tile hidden (reduction)
        n_k = d_hid_p // th_eff
    if vmem_need(tm_eff, th_eff, tn_eff, n_k, n_j) > vmem_budget and n_j == 1:
        tn_eff = _pick_tile(d_out_p, 1024)             # tile d_out (v7x 64 MiB)
        n_j = d_out_p // tn_eff
    while (vmem_need(tm_eff, th_eff, tn_eff, n_k, n_j) > vmem_budget
           and tm_eff > sub):
        tm_eff = max(sub, _round_up(tm_eff // 2, sub)) # last resort: shrink tm
    n_i = _cdiv(B_sub, tm_eff)
    B_p = n_i * tm_eff

    # ---- per-call padding: x only ------------------------------------------
    if (B_p, d_in_p) == (B, d_in) and x.dtype == cdt:
        x_p = x
    else:
        x_p = jnp.zeros((B_p, d_in_p), cdt).at[:B, :d_in].set(x.astype(cdt))

    # ---- BlockSpecs ---------------------------------------------------------
    inv = pl.Buffered(1)
    w1_mode = inv if n_k == 1 else None                # invariant => single-buf
    w2_mode = inv if (n_k == 1 and n_j == 1) else None

    in_specs = [
        pl.BlockSpec((tm_eff, d_in_p), lambda i, j, k: (i, 0)),                        # x
        pl.BlockSpec((d_in_p, th_eff), lambda i, j, k: (0, k), pipeline_mode=w1_mode), # W1^T
        pl.BlockSpec((1, th_eff), lambda i, j, k: (0, k), pipeline_mode=w1_mode),      # b1
        pl.BlockSpec((th_eff, tn_eff), lambda i, j, k: (k, j), pipeline_mode=w2_mode), # W2^T
        pl.BlockSpec((1, tn_eff), lambda i, j, k: (0, j), pipeline_mode=w2_mode),      # b2
    ]
    out_spec = pl.BlockSpec((tm_eff, tn_eff), lambda i, j, k: (i, j))

    if n_k == 1:
        kernel = _expert_kernel_resident
        scratch_shapes = []
    else:
        kernel = _expert_kernel_tiled
        scratch_shapes = [pltpu.VMEM((tm_eff, tn_eff), jnp.float32)]

    need = vmem_need(tm_eff, th_eff, tn_eff, n_k, n_j)
    vmem_limit = min(int(need * 1.25) + (2 << 20), vmem_phys)

    # ---- advisory cost estimate --------------------------------------------
    w1_bytes = d_in_p * d_hid_p * csz
    w2_bytes = d_hid_p * d_out_p * csz
    w_reads = 1 if (n_k == 1 and n_j == 1) else n_i    # resident vs re-streamed
    flops = 2 * B_p * (n_j * d_in_p * d_hid_p + d_hid_p * d_out_p)
    bytes_accessed = (B_p * d_in_p * csz
                      + w_reads * (w1_bytes + w2_bytes)
                      + B_p * d_out_p * osz)
    cost = pl.CostEstimate(flops=flops, transcendentals=0,
                           bytes_accessed=bytes_accessed)

    out_p = pl.pallas_call(
        kernel,
        out_shape=jax.ShapeDtypeStruct((B_p, d_out_p), out_dtype),
        grid_spec=pltpu.PrefetchScalarGridSpec(
            num_scalar_prefetch=0,
            grid=(n_i, n_j, n_k),
            in_specs=in_specs,
            out_specs=out_spec,
            scratch_shapes=scratch_shapes,
        ),
        compiler_params=pltpu.CompilerParams(
            dimension_semantics=("parallel", "parallel", "arbitrary"),
            vmem_limit_bytes=vmem_limit,
        ),
        cost_estimate=cost,
    )(x_p, w1_p, b1_p, w2_p, b2_p)

    return out_p[:B, :d_out]


def expert_forward(x, w1_t, b1, w2_t, b2, *, compute_dtype=jnp.bfloat16,
                   tm=512, th=512, tn=None):
    """Convenience one-shot wrapper (prep + forward).  For repeated calls,
    call prepare_expert_params once and reuse the padded params."""
    w1_p, b1_p, w2_p, b2_p, d_out = prepare_expert_params(
        w1_t, b1, w2_t, b2, compute_dtype)
    return expert_forward_padded(x, w1_p, b1_p, w2_p, b2_p,
                                 d_out=d_out, tm=tm, th=th, tn=tn)


def init_expert_params(key, input_dim, hidden_dim, output_dim, dtype=jnp.float32):
    """Deterministic synthetic init (mimics nn.Linear's uniform(-1/sqrt(fan_in), ...))."""
    k1, k2, k3, k4 = jax.random.split(key, 4)
    lim1 = 1.0 / (input_dim ** 0.5)
    lim2 = 1.0 / (hidden_dim ** 0.5)
    # Stored directly in the transposed ("x @ W") layout used by the kernel.
    w1_t = jax.random.uniform(k1, (input_dim, hidden_dim), dtype, -lim1, lim1)
    b1 = jax.random.uniform(k2, (1, hidden_dim), dtype, -lim1, lim1)
    w2_t = jax.random.uniform(k3, (hidden_dim, output_dim), dtype, -lim2, lim2)
    b2 = jax.random.uniform(k4, (1, output_dim), dtype, -lim2, lim2)
    return w1_t, b1, w2_t, b2


if __name__ == "__main__":
    # Small shapes consistent with the module: x is [batch, input_dim].
    batch, input_dim, hidden_dim, output_dim = 16, 32, 64, 16

    key = jax.random.PRNGKey(0)
    kx, kp = jax.random.split(key)
    x = jax.random.normal(kx, (batch, input_dim), jnp.float32)
    w1_t, b1, w2_t, b2 = init_expert_params(kp, input_dim, hidden_dim, output_dim)

    # Pure-JAX reference (eval-mode dropout == identity).
    ref = jnp.maximum(x @ w1_t + b1, 0.0) @ w2_t + b2

    # f32 MXU operands: bit-for-bit comparable to the reference.
    p32 = prepare_expert_params(w1_t, b1, w2_t, b2, compute_dtype=jnp.float32)
    out_f32 = expert_forward_padded(x, p32[0], p32[1], p32[2], p32[3], d_out=p32[4])
    jax.block_until_ready(out_f32)
    assert out_f32.shape == (batch, output_dim)
    assert jnp.allclose(out_f32, ref, atol=1e-5, rtol=1e-5), "f32 mismatch vs reference"

    # Default (bf16) path: weights prepared once, reused across calls.
    pbf = prepare_expert_params(w1_t, b1, w2_t, b2)     # bf16 by default
    out_bf16 = expert_forward_padded(x, pbf[0], pbf[1], pbf[2], pbf[3], d_out=pbf[4])
    jax.block_until_ready(out_bf16)
    assert out_bf16.shape == (batch, output_dim)
    assert jnp.allclose(out_bf16, ref, atol=5e-2, rtol=5e-2), "bf16 mismatch vs reference"

    # Convenience one-shot wrapper also works.
    out_conv = expert_forward(x, w1_t, b1, w2_t, b2)
    jax.block_until_ready(out_conv)
    assert out_conv.shape == (batch, output_dim)

    print("KERNEL_OK")
</pallas_src>

<mosaic_0001>
module attributes {stable_mosaic.version = 11 : i64} {
  func.func @_expert_kernel_resident(%arg0: i32, %arg1: i32, %arg2: i32, %arg3: memref<8x128xf32, #tpu.memory_space<vmem>>, %arg4: memref<128x128xf32, #tpu.memory_space<vmem>>, %arg5: memref<1x128xf32, #tpu.memory_space<vmem>>, %arg6: memref<128x128xf32, #tpu.memory_space<vmem>>, %arg7: memref<1x128xf32, #tpu.memory_space<vmem>>, %arg8: memref<8x128xf32, #tpu.memory_space<vmem>>) attributes {dimension_semantics = [#tpu.dimension_semantics<parallel>, #tpu.dimension_semantics<parallel>, #tpu.dimension_semantics<arbitrary>], iteration_bounds = array<i64: 2, 1, 1>, scalar_prefetch = 0 : i64, scratch_operands = 0 : i64, tpu.core_type = #tpu.core_type<tc>, window_params = [{transform_indices = @transform_0, window_bounds = array<i64: 8, 128>}, {pipeline_mode = #tpu.pipeline_mode<synchronous>, transform_indices = @transform_1, window_bounds = array<i64: 128, 128>}, {pipeline_mode = #tpu.pipeline_mode<synchronous>, transform_indices = @transform_2, window_bounds = array<i64: 1, 128>}, {pipeline_mode = #tpu.pipeline_mode<synchronous>, transform_indices = @transform_3, window_bounds = array<i64: 128, 128>}, {pipeline_mode = #tpu.pipeline_mode<synchronous>, transform_indices = @transform_4, window_bounds = array<i64: 1, 128>}, {transform_indices = @transform_5, window_bounds = array<i64: 8, 128>}]} {
    %c0 = arith.constant 0 : index
    %c0_0 = arith.constant 0 : index
    %0 = vector.load %arg3[%c0, %c0_0] : memref<8x128xf32, #tpu.memory_space<vmem>>, vector<8x128xf32>
    %c0_1 = arith.constant 0 : index
    %c0_2 = arith.constant 0 : index
    %1 = vector.load %arg4[%c0_1, %c0_2] : memref<128x128xf32, #tpu.memory_space<vmem>>, vector<128x128xf32>
    %cst = arith.constant dense<0.000000e+00> : vector<8x128xf32>
    %2 = tpu.matmul %0, %1, %cst {dimension_numbers = #tpu.dot_dimension_numbers<[1], [0], [0], [1], [0, 0, 1, 1], [], []>} : vector<8x128xf32>, vector<128x128xf32>, vector<8x128xf32> -> vector<8x128xf32>
    %c0_3 = arith.constant 0 : index
    %c0_4 = arith.constant 0 : index
    %3 = vector.load %arg5[%c0_3, %c0_4] : memref<1x128xf32, #tpu.memory_space<vmem>>, vector<1x128xf32>
    %4 = vector.broadcast %3 : vector<1x128xf32> to vector<8x128xf32>
    %5 = arith.addf %2, %4 : vector<8x128xf32>
    %cst_5 = arith.constant 0.000000e+00 : f32
    %6 = vector.broadcast %cst_5 : f32 to vector<8x128xf32>
    %7 = arith.maximumf %5, %6 : vector<8x128xf32>
    %c0_6 = arith.constant 0 : index
    %c0_7 = arith.constant 0 : index
    %8 = vector.load %arg6[%c0_6, %c0_7] : memref<128x128xf32, #tpu.memory_space<vmem>>, vector<128x128xf32>
    %cst_8 = arith.constant dense<0.000000e+00> : vector<8x128xf32>
    %9 = tpu.matmul %7, %8, %cst_8 {dimension_numbers = #tpu.dot_dimension_numbers<[1], [0], [0], [1], [0, 0, 1, 1], [], []>} : vector<8x128xf32>, vector<128x128xf32>, vector<8x128xf32> -> vector<8x128xf32>
    %c0_9 = arith.constant 0 : index
    %c0_10 = arith.constant 0 : index
    %10 = vector.load %arg7[%c0_9, %c0_10] : memref<1x128xf32, #tpu.memory_space<vmem>>, vector<1x128xf32>
    %11 = vector.broadcast %10 : vector<1x128xf32> to vector<8x128xf32>
    %12 = arith.addf %9, %11 : vector<8x128xf32>
    %c0_11 = arith.constant 0 : index
    %c0_12 = arith.constant 0 : index
    %13 = vector.load %arg8[%c0_11, %c0_12] : memref<8x128xf32, #tpu.memory_space<vmem>>, vector<8x128xf32>
    tpu.vector_store %arg8[%c0_11, %c0_12], %12 {strides = array<i32>} : memref<8x128xf32, #tpu.memory_space<vmem>>, vector<8x128xf32>,
    return
  }
  func.func @transform_0(%arg0: i32, %arg1: i32, %arg2: i32) -> (i32, i32) {
    %c0_i32 = arith.constant 0 : i32
    %c0_i32_0 = arith.constant 0 : i32
    return %arg0, %c0_i32 : i32, i32
  }
  func.func @transform_1(%arg0: i32, %arg1: i32, %arg2: i32) -> (i32, i32) {
    %c0_i32 = arith.constant 0 : i32
    %c0_i32_0 = arith.constant 0 : i32
    return %c0_i32, %arg2 : i32, i32
  }
  func.func @transform_2(%arg0: i32, %arg1: i32, %arg2: i32) -> (i32, i32) {
    %c0_i32 = arith.constant 0 : i32
    %c0_i32_0 = arith.constant 0 : i32
    return %c0_i32, %arg2 : i32, i32
  }
  func.func @transform_3(%arg0: i32, %arg1: i32, %arg2: i32) -> (i32, i32) {
    %c0_i32 = arith.constant 0 : i32
    return %arg2, %arg1 : i32, i32
  }
  func.func @transform_4(%arg0: i32, %arg1: i32, %arg2: i32) -> (i32, i32) {
    %c0_i32 = arith.constant 0 : i32
    %c0_i32_0 = arith.constant 0 : i32
    return %c0_i32, %arg1 : i32, i32
  }
  func.func @transform_5(%arg0: i32, %arg1: i32, %arg2: i32) -> (i32, i32) {
    %c0_i32 = arith.constant 0 : i32
    return %arg0, %arg1 : i32, i32
  }
}

</mosaic_0001>

<llo_original>
// kernel: expert_forward_padded.1
$region0: #{expert_forward_padded.1}
  #allocation0 [shape = 'u32[]', space=smem, size = 0x4, offset = 0x4, fixed_abs, tag = 'smem constant byte address 0x4 - core index']
  #allocation1 [shape = 'u32[144,128]{1,0:T(1,128)}', space=vmem, size = 0x12000, scoped, tag = 'internal scratch']
  %s0 = inlined_call_operand.vmem [shape: f32[16,128], index: 0, kind: input, shape index: {}]
  %s1 = inlined_call_operand.hbm [shape: f32[128,128], index: 1, kind: input, shape index: {}]
  %s2 = inlined_call_operand.vmem [shape: f32[1,128], index: 2, kind: input, shape index: {}]
  %s3 = inlined_call_operand.hbm [shape: f32[128,128], index: 3, kind: input, shape index: {}]
  %s4 = inlined_call_operand.vmem [shape: f32[1,128], index: 4, kind: input, shape index: {}]
  %s5 = inlined_call_operand.hbm [shape: f32[16,128], index: 5, kind: output, shape index: {}]
  %s6 = sld [smem:[#allocation0]]
  $region61: #{expert_forward_padded.1} parent=0
    _
  %s8 = ssub.s32 1, %s6
  %s9 = scalar_select 0, %s8, %s6
  $region1: #{expert_forward_padded.1} parent=0
    #allocation2 [shape = 'u8[65536]{0}', space=vmem, size = 0x10000, scoped, tag = 'input window, operand 1, single buffered']
    #allocation3 [shape = 's32[2]{0}', space=sflag, size = 0x8, scoped, tag = 'scoped memory for expert_forward_padded.1']
    #allocation4 [shape = 's32[2]{0}', space=sflag, size = 0x8, scoped, tag = 'scoped memory for expert_forward_padded.1']
    #allocation5 [shape = 'u8[65536]{0}', space=vmem, size = 0x10000, scoped, tag = 'input window, operand 3, single buffered']
    #allocation6 [shape = 's32[1]{0}', space=sflag, size = 0x4, scoped, tag = 'scoped memory for expert_forward_padded.1']
    #allocation7 [shape = 'u8[8192]{0}', space=vmem, size = 0x2000, scoped, tag = 'output window, operand 0']
    %10 = vsyncpa [#allocation3], 0
    %11 = vsyncpa [#allocation6], 0
    %12 = vsyncpa [#allocation4], 0
    %s13 = scalar_lea.sflag [#allocation4], 1
    %14 = vsyncpa %s13, 0
    loop: start=0, step=1, limit=4
    $region2: #{expert_forward_padded.1} parent=1 // loop_pre_header
      _
    $region3: #{expert_forward_padded.1} parent=1 // loop_header
      %s16 = sphi 0, %s20
      %p17 = scmp.ge.s32.totalorder %s16, 4
      %s23 = sphi 0, %s42
      %s24 = sphi 0, %s38
      %s25 = sphi 0, %s34
      %s26 = sphi 0, %s23
      %s27 = sphi 0, %s24
      %s28 = sphi 0, %s25
      %s29 = sphi 0, %s26
      %s30 = sphi 0, %s27
      %s31 = sphi 0, %s28
      %s45 = sphi 0, %s47
      %s48 = sphi 0, %s45
      %s49 = sphi 0, %s48
      %s65 = sphi 0, %s49
      %s71 = sphi 0, %s73
      %s74 = sphi 0, %s71
      %s75 = sphi 0, %s74
      %s91 = sphi 0, %s75
      %s97 = sphi 0, %s99
      %s100 = sphi 0, %s97
      %s101 = sphi 0, %s100
      %s117 = sphi 0, %s101
      %s125 = sphi 0, %s127
      %s128 = sphi 0, %s125
      %s129 = sphi 0, %s128
      %s145 = sphi 0, %s129
      %s151 = sphi 0, %s153
      %s154 = sphi 0, %s151
      %s155 = sphi 0, %s154
      %s171 = sphi 0, %s155
      %s179 = sphi 0, %s181
      %s182 = sphi 0, %s179
      %s183 = sphi 0, %s182
      %s199 = sphi 0, %s183
    $region4: #{expert_forward_padded.1} parent=1 // loop_header_branch
      %19 = sbr.rel (%p17) target = $region8
    $region5: #{expert_forward_padded.1} parent=1 // loop_body
      %s21 = ssub.s32 %s16, 1
      %s22 = ssub.s32 %s16, 2
      %s32 = sadd.s32 1, %s25
      %p33 = scmp.ge.s32.totalorder %s32, 1
      %s34 = scalar_select %p33, 0, %s32
      %s35 = sadd.s32 1, %s24
      %s36 = scalar_select %p33, %s35, %s24
      %p37 = scmp.ge.s32.totalorder %s36, 1
      %s38 = scalar_select %p37, 0, %s36
      %s39 = sadd.s32 1, %s23
      %s40 = scalar_select %p37, %s39, %s23
      %p41 = scmp.ge.s32.totalorder %s40, 2
      %s42 = scalar_select %p41, 0, %s40
      %s43 = ssub.s32 %s23, %s42
      %p44 = scmp.eq.s32.totalorder %s43, 0
      %s46 = sadd.s32 %s45, 1
      %s47 = scalar_select %p44, %s45, %s46
      %p50 = pneg %p44
      %p51 = scmp.eq.s32.totalorder %s16, 1
      %p52 = por %p50, %p51
      %p53 = scmp.ne.s32.totalorder %s45, %s48
      %p54 = scmp.eq.s32.totalorder %s16, 0
      %p55 = por %p53, %p54
      %p56 = scmp.ne.s32.totalorder %s45, %s48
      %p57 = scmp.eq.s32.totalorder %s21, 1
      %p58 = por %p56, %p57
      %p59 = scmp.ne.s32.totalorder %s48, %s49
      %p60 = scmp.eq.s32.totalorder %s21, 0
      %p61 = por %p59, %p60
      %p62 = scmp.ne.s32.totalorder %s48, %s49
      %p63 = scmp.eq.s32.totalorder %s22, 1
      %p64 = por %p62, %p63
      %p66 = scmp.ne.s32.totalorder %s49, %s65
      %p67 = scmp.eq.s32.totalorder %s22, 0
      %p68 = por %p66, %p67
      %s69 = ssub.s32 %s25, %s34
      %p70 = scmp.eq.s32.totalorder %s69, 0
      %s72 = sadd.s32 %s71, 1
      %s73 = scalar_select %p70, %s71, %s72
      %p76 = pneg %p70
      %p77 = scmp.eq.s32.totalorder %s16, 1
      %p78 = por %p76, %p77
      %p79 = scmp.ne.s32.totalorder %s71, %s74
      %p80 = scmp.eq.s32.totalorder %s16, 0
      %p81 = por %p79, %p80
      %p82 = scmp.ne.s32.totalorder %s71, %s74
      %p83 = scmp.eq.s32.totalorder %s21, 1
      %p84 = por %p82, %p83
      %p85 = scmp.ne.s32.totalorder %s74, %s75
      %p86 = scmp.eq.s32.totalorder %s21, 0
      %p87 = por %p85, %p86
      %p88 = scmp.ne.s32.totalorder %s74, %s75
      %p89 = scmp.eq.s32.totalorder %s22, 1
      %p90 = por %p88, %p89
      %p92 = scmp.ne.s32.totalorder %s75, %s91
      %p93 = scmp.eq.s32.totalorder %s22, 0
      %p94 = por %p92, %p93
      %s95 = ssub.s32 %s25, %s34
      %p96 = scmp.eq.s32.totalorder %s95, 0
      %s98 = sadd.s32 %s97, 1
      %s99 = scalar_select %p96, %s97, %s98
      %p102 = pneg %p96
      %p103 = scmp.eq.s32.totalorder %s16, 1
      %p104 = por %p102, %p103
      %p105 = scmp.ne.s32.totalorder %s97, %s100
      %p106 = scmp.eq.s32.totalorder %s16, 0
      %p107 = por %p105, %p106
      %p108 = scmp.ne.s32.totalorder %s97, %s100
      %p109 = scmp.eq.s32.totalorder %s21, 1
      %p110 = por %p108, %p109
      %p111 = scmp.ne.s32.totalorder %s100, %s101
      %p112 = scmp.eq.s32.totalorder %s21, 0
      %p113 = por %p111, %p112
      %p114 = scmp.ne.s32.totalorder %s100, %s101
      %p115 = scmp.eq.s32.totalorder %s22, 1
      %p116 = por %p114, %p115
      %p118 = scmp.ne.s32.totalorder %s101, %s117
      %p119 = scmp.eq.s32.totalorder %s22, 0
      %p120 = por %p118, %p119
      %s121 = ssub.s32 %s25, %s34
      %s122 = ssub.s32 %s24, %s38
      %s123 = sor.u32 %s121, %s122
      %p124 = scmp.eq.s32.totalorder %s123, 0
      %s126 = sadd.s32 %s125, 1
      %s127 = scalar_select %p124, %s125, %s126
      %p130 = pneg %p124
      %p131 = scmp.eq.s32.totalorder %s16, 1
      %p132 = por %p130, %p131
      %p133 = scmp.ne.s32.totalorder %s125, %s128
      %p134 = scmp.eq.s32.totalorder %s16, 0
      %p135 = por %p133, %p134
      %p136 = scmp.ne.s32.totalorder %s125, %s128
      %p137 = scmp.eq.s32.totalorder %s21, 1
      %p138 = por %p136, %p137
      %p139 = scmp.ne.s32.totalorder %s128, %s129
      %p140 = scmp.eq.s32.totalorder %s21, 0
      %p141 = por %p139, %p140
      %p142 = scmp.ne.s32.totalorder %s128, %s129
      %p143 = scmp.eq.s32.totalorder %s22, 1
      %p144 = por %p142, %p143
      %p146 = scmp.ne.s32.totalorder %s129, %s145
      %p147 = scmp.eq.s32.totalorder %s22, 0
      %p148 = por %p146, %p147
      %s149 = ssub.s32 %s24, %s38
      %p150 = scmp.eq.s32.totalorder %s149, 0
      %s152 = sadd.s32 %s151, 1
      %s153 = scalar_select %p150, %s151, %s152
      %p156 = pneg %p150
      %p157 = scmp.eq.s32.totalorder %s16, 1
      %p158 = por %p156, %p157
      %p159 = scmp.ne.s32.totalorder %s151, %s154
      %p160 = scmp.eq.s32.totalorder %s16, 0
      %p161 = por %p159, %p160
      %p162 = scmp.ne.s32.totalorder %s151, %s154
      %p163 = scmp.eq.s32.totalorder %s21, 1
      %p164 = por %p162, %p163
      %p165 = scmp.ne.s32.totalorder %s154, %s155
      %p166 = scmp.eq.s32.totalorder %s21, 0
      %p167 = por %p165, %p166
      %p168 = scmp.ne.s32.totalorder %s154, %s155
      %p169 = scmp.eq.s32.totalorder %s22, 1
      %p170 = por %p168, %p169
      %p172 = scmp.ne.s32.totalorder %s155, %s171
      %p173 = scmp.eq.s32.totalorder %s22, 0
      %p174 = por %p172, %p173
      %s175 = ssub.s32 %s23, %s42
      %s176 = ssub.s32 %s24, %s38
      %s177 = sor.u32 %s175, %s176
      %p178 = scmp.eq.s32.totalorder %s177, 0
      %s180 = sadd.s32 %s179, 1
      %s181 = scalar_select %p178, %s179, %s180
      %p184 = pneg %p178
      %p185 = scmp.eq.s32.totalorder %s16, 1
      %p186 = por %p184, %p185
      %p187 = scmp.ne.s32.totalorder %s179, %s182
      %p188 = scmp.eq.s32.totalorder %s16, 0
      %p189 = por %p187, %p188
      %p190 = scmp.ne.s32.totalorder %s179, %s182
      %p191 = scmp.eq.s32.totalorder %s21, 1
      %p192 = por %p190, %p191
      %p193 = scmp.ne.s32.totalorder %s182, %s183
      %p194 = scmp.eq.s32.totalorder %s21, 0
      %p195 = por %p193, %p194
      %p196 = scmp.ne.s32.totalorder %s182, %s183
      %p197 = scmp.eq.s32.totalorder %s22, 1
      %p198 = por %p196, %p197
      %p200 = scmp.ne.s32.totalorder %s183, %s199
      %p201 = scmp.eq.s32.totalorder %s22, 0
      %p202 = por %p200, %p201
      %p203 = scmp.le.s32.totalorder 1, %s16
      %p204 = scmp.lt.s32.totalorder %s16, 3
      %p205 = pnand %p203, %p204
      %p206 = pneg %p205
      // Predicated region
      $region9: #{expert_forward_padded.1} parent=5 // pred_check
        _
      $region10: #{expert_forward_padded.1} parent=5 // pred_check_branch
        %208 = sbr.rel (%p205) target = $region12
      $region11: #{expert_forward_padded.1} parent=5 // pred_region
        %s209 = ssub.s32 %s16, 1
        // Predicated region
        $region13: #{expert_forward_padded.1} parent=11 // pred_check
          %p210 = pneg %p87
        $region14: #{expert_forward_padded.1} parent=11 // pred_check_branch
          %212 = sbr.rel (%p210) target = $region16
        $region15: #{expert_forward_padded.1} parent=11 // pred_region
          %s214 = ssub.s32 2048, 2048
          %215 = vsyncadd [#allocation3], %s214
          %s216 = smul.addr %s28, 128
          %s217 = scalar_lea.hbm %s1, %s216
          %s218 = sshll.u32 [#allocation2], 4
          %s219 = int_to_ptr.vmem [resolvable:$true] %s218
          %224 = dma.hbm_to_vmem [thread:$0]  %s217, 2048, %s219, [#allocation3], 128, 128, 8
        $region16: #{expert_forward_padded.1} parent=11 // pred_fallthru
          _
        // Predicated region
        $region17: #{expert_forward_padded.1} parent=11 // pred_check
          %p225 = pneg %p113
        $region18: #{expert_forward_padded.1} parent=11 // pred_check_branch
          %227 = sbr.rel (%p225) target = $region20
        $region19: #{expert_forward_padded.1} parent=11 // pred_region
          %p228 = scmp.lt.s32.totalorder %s28, 0
          %s229 = scalar_select %p228, %s28, 0
          %s230 = scalar_lea.vmem %s2, %s229
        $region20: #{expert_forward_padded.1} parent=11 // pred_fallthru
          _
        // Predicated region
        $region21: #{expert_forward_padded.1} parent=11 // pred_check
          %p231 = pneg %p141
        $region22: #{expert_forward_padded.1} parent=11 // pred_check_branch
          %233 = sbr.rel (%p231) target = $region24
        $region23: #{expert_forward_padded.1} parent=11 // pred_region
          %s234 = smul.u32 16, %s28
          %s236 = ssub.s32 2048, 2048
          %237 = vsyncadd [#allocation6], %s236
          %s238 = sadd.s32 %s27, %s234
          %s239 = smul.addr %s238, 128
          %s240 = scalar_lea.hbm %s3, %s239
          %s241 = sshll.u32 [#allocation5], 4
          %s242 = int_to_ptr.vmem [resolvable:$true] %s241
          %247 = dma.hbm_to_vmem [thread:$0]  %s240, 2048, %s242, [#allocation6], 128, 128, 8
        $region24: #{expert_forward_padded.1} parent=11 // pred_fallthru
          _
        // Predicated region
        $region25: #{expert_forward_padded.1} parent=11 // pred_check
          %p248 = pneg %p167
        $region26: #{expert_forward_padded.1} parent=11 // pred_check_branch
          %250 = sbr.rel (%p248) target = $region28
        $region27: #{expert_forward_padded.1} parent=11 // pred_region
          %p251 = scmp.lt.s32.totalorder %s27, 0
          %s252 = scalar_select %p251, %s27, 0
          %s253 = scalar_lea.vmem %s4, %s252
        $region28: #{expert_forward_padded.1} parent=11 // pred_fallthru
          _
      $region12: #{expert_forward_padded.1} parent=5 // pred_fallthru
        _
      %p254 = scmp.lt.s32.totalorder %s16, 2
      // Predicated region
      $region29: #{expert_forward_padded.1} parent=5 // pred_check
        %p255 = pneg %p254
      $region30: #{expert_forward_padded.1} parent=5 // pred_check_branch
        %257 = sbr.rel (%p255) target = $region32
      $region31: #{expert_forward_padded.1} parent=5 // pred_region
        // Predicated region
        $region33: #{expert_forward_padded.1} parent=31 // pred_check
          %p258 = pneg %p55
        $region34: #{expert_forward_padded.1} parent=31 // pred_check_branch
          %260 = sbr.rel (%p258) target = $region36
        $region35: #{expert_forward_padded.1} parent=31 // pred_region
          %p261 = scmp.lt.s32.totalorder %s23, 1
          %s262 = scalar_select %p261, %s23, 1
          %s263 = smul.addr %s262, 8
          %s264 = scalar_lea.vmem %s0, %s263
        $region36: #{expert_forward_padded.1} parent=31 // pred_fallthru
          _
      $region32: #{expert_forward_padded.1} parent=5 // pred_fallthru
        _
      %p265 = scmp.le.s32.totalorder 1, %s16
      %p266 = scmp.lt.s32.totalorder %s16, 3
      %p267 = pnand %p265, %p266
      %p268 = pneg %p267
      // Predicated region
      $region37: #{expert_forward_padded.1} parent=5 // pred_check
        _
      $region38: #{expert_forward_padded.1} parent=5 // pred_check_branch
        %270 = sbr.rel (%p267) target = $region40
      $region39: #{expert_forward_padded.1} parent=5 // pred_region
        %s271 = ssub.s32 %s16, 1
        // Predicated region
        $region41: #{expert_forward_padded.1} parent=39 // pred_check
          %p272 = pneg %p87
        $region42: #{expert_forward_padded.1} parent=39 // pred_check_branch
          %274 = sbr.rel (%p272) target = $region44
        $region43: #{expert_forward_padded.1} parent=39 // pred_region
          %275 = dma.done [#allocation3], 2048
        $region44: #{expert_forward_padded.1} parent=39 // pred_fallthru
          _
        // Predicated region
        $region45: #{expert_forward_padded.1} parent=39 // pred_check
          %p276 = pneg %p141
        $region46: #{expert_forward_padded.1} parent=39 // pred_check_branch
          %278 = sbr.rel (%p276) target = $region48
        $region47: #{expert_forward_padded.1} parent=39 // pred_region
          %279 = dma.done [#allocation6], 2048
        $region48: #{expert_forward_padded.1} parent=39 // pred_fallthru
          _
        %p280 = scmp.lt.s32.totalorder %s26, 1
        %s281 = scalar_select %p280, %s26, 1
        %s282 = smul.addr %s281, 8
        %s283 = scalar_lea.vmem %s0, %s282
        %p284 = pneg %p61
        %p285 = pneg %p58
        %p286 = pneg %p87
        %p287 = pneg %p84
        %p288 = scmp.lt.s32.totalorder %s28, 0
        %s289 = scalar_select %p288, %s28, 0
        %s290 = scalar_lea.vmem %s2, %s289
        %p291 = pneg %p113
        %p292 = pneg %p110
        %p293 = pneg %p141
        %p294 = pneg %p138
        %p295 = scmp.lt.s32.totalorder %s27, 0
        %s296 = scalar_select %p295, %s27, 0
        %s297 = scalar_lea.vmem %s4, %s296
        %p298 = pneg %p167
        %p299 = pneg %p164
        %p300 = pneg %p195
        %p301 = pneg %p192
        %s302 = sand.u32 %s182, 1
        %s303 = scalar_lea.sflag [#allocation4], %s302
        %s304 = sand.u32 %s182, 1
        %s305 = smul.addr %s304, 8
        %s306 = scalar_lea.vmem [#allocation7], %s305
        %p307 = scmp.lt.s32.totalorder %s26, 1
        %s308 = scalar_select %p307, %s26, 1
        %s309 = smul.addr %s308, 8
        %s310 = scalar_lea.vmem %s0, %s309
        %p311 = scmp.lt.s32.totalorder %s28, 0
        %s312 = scalar_select %p311, %s28, 0
        %s313 = scalar_lea.vmem %s2, %s312
        %s314 = smul.u32 16, %s28
        %p315 = scmp.lt.s32.totalorder %s27, 0
        %s316 = scalar_select %p315, %s27, 0
        %s317 = scalar_lea.vmem %s4, %s316
        %v318 = vld [vmem:[%s310] sm:$0xff]
        %v319 = vld [vmem:[#allocation2] sm:$0xff]
        %v320 = vld [vmem:[#allocation2 + $0x8] sm:$0xff]
        %v321 = vld [vmem:[#allocation2 + $0x10] sm:$0xff]
        %v322 = vld [vmem:[#allocation2 + $0x18] sm:$0xff]
        %v323 = vld [vmem:[#allocation2 + $0x20] sm:$0xff]
        %v324 = vld [vmem:[#allocation2 + $0x28] sm:$0xff]
        %v325 = vld [vmem:[#allocation2 + $0x30] sm:$0xff]
        %v326 = vld [vmem:[#allocation2 + $0x38] sm:$0xff]
        %v327 = vld [vmem:[#allocation2 + $0x40] sm:$0xff]
        %v328 = vld [vmem:[#allocation2 + $0x48] sm:$0xff]
        %v329 = vld [vmem:[#allocation2 + $0x50] sm:$0xff]
        %v330 = vld [vmem:[#allocation2 + $0x58] sm:$0xff]
        %v331 = vld [vmem:[#allocation2 + $0x60] sm:$0xff]
        %v332 = vld [vmem:[#allocation2 + $0x68] sm:$0xff]
        %v333 = vld [vmem:[#allocation2 + $0x70] sm:$0xff]
        %v334 = vld [vmem:[#allocation2 + $0x78] sm:$0xff]
        %v335 = vld [vmem:[%s313] sm:$0x1]
        %v337 = vlaneseq
        %v338 = vshrl.u32 %v337, 7
        %v339 = vsub.s32 0, %v338
        %v340 = vrot.slane %v335, %v339
        %342 = vmatprep.subr.mxu0 0.0
        %343 = vmatpush1.msra.mxu0 %v334
        %344 = vmatprep.subr.mxu0 0.0
        %345 = vmatpush1.msra.mxu0 %v333
        %346 = vmatprep.subr.mxu0 0.0
        %347 = vmatpush1.msra.mxu0 %v332
        %348 = vmatprep.subr.mxu0 0.0
        %349 = vmatpush1.msra.mxu0 %v331
        %350 = vmatprep.subr.mxu0 0.0
        %351 = vmatpush1.msra.mxu0 %v330
        %352 = vmatprep.subr.mxu0 0.0
        %353 = vmatpush1.msra.mxu0 %v329
        %354 = vmatprep.subr.mxu0 0.0
        %355 = vmatpush1.msra.mxu0 %v328
        %356 = vmatprep.subr.mxu0 0.0
        %357 = vmatpush1.msra.mxu0 %v327
        %358 = vmatprep.subr.mxu0 0.0
        %359 = vmatpush1.msra.mxu0 %v326
        %360 = vmatprep.subr.mxu0 0.0
        %361 = vmatpush1.msra.mxu0 %v325
        %362 = vmatprep.subr.mxu0 0.0
        %363 = vmatpush1.msra.mxu0 %v324
        %364 = vmatprep.subr.mxu0 0.0
        %365 = vmatpush1.msra.mxu0 %v323
        %366 = vmatprep.subr.mxu0 0.0
        %367 = vmatpush1.msra.mxu0 %v322
        %368 = vmatprep.subr.mxu0 0.0
        %369 = vmatpush1.msra.mxu0 %v321
        %370 = vmatprep.subr.mxu0 0.0
        %371 = vmatpush1.msra.mxu0 %v320
        %372 = vmatprep.subr.mxu0 0.0
        %373 = vmatpush1.msra.mxu0 %v319
        %374 = vmatprep.subr.mxu0 0.0
        %375 = vmatpush2.msra.mxu0 0.0
        %376 = vmatprep.subr.mxu0 0.0
        %377 = vmatpush2.msra.mxu0 0.0
        %378 = vmatprep.subr.mxu0 0.0
        %379 = vmatpush2.msra.mxu0 0.0
        %380 = vmatprep.subr.mxu0 0.0
        %381 = vmatpush2.msra.mxu0 0.0
        %382 = vmatprep.subr.mxu0 0.0
        %383 = vmatpush2.msra.mxu0 0.0
        %384 = vmatprep.subr.mxu0 0.0
        %385 = vmatpush2.msra.mxu0 0.0
        %386 = vmatprep.subr.mxu0 0.0
        %387 = vmatpush2.msra.mxu0 0.0
        %388 = vmatprep.subr.mxu0 0.0
        %389 = vmatpush2.msra.mxu0 0.0
        %390 = vmatprep.subr.mxu0 0.0
        %391 = vmatpush2.msra.mxu0 0.0
        %392 = vmatprep.subr.mxu0 0.0
        %393 = vmatpush2.msra.mxu0 0.0
        %394 = vmatprep.subr.mxu0 0.0
        %395 = vmatpush2.msra.mxu0 0.0
        %396 = vmatprep.subr.mxu0 0.0
        %397 = vmatpush2.msra.mxu0 0.0
        %398 = vmatprep.subr.mxu0 0.0
        %399 = vmatpush2.msra.mxu0 0.0
        %400 = vmatprep.subr.mxu0 0.0
        %401 = vmatpush2.msra.mxu0 0.0
        %402 = vmatprep.subr.mxu0 0.0
        %403 = vmatpush2.msra.mxu0 0.0
        %404 = vmatprep.subr.mxu0 0.0
        %405 = vmatpush2.msra.mxu0 0.0
        %406 = vmatprep.mubr.f32.mxu0 0.0
        %407 = vmatmul.mubr.f32.gmra.mxu0 %v318
        %v408 = vpop.f32.mrf.mxu0
        %v409 = vadd.f32 %v340, %v408
        %v410 = vpop.f32.mrf.mxu0
        %411 = vdwg.mxu0
        %v412 = vmax.f32 %v409, 0.0
        %v413 = vld [vmem:[#allocation5] sm:$0xff]
        %v414 = vld [vmem:[#allocation5 + $0x8] sm:$0xff]
        %v415 = vld [vmem:[#allocation5 + $0x10] sm:$0xff]
        %v416 = vld [vmem:[#allocation5 + $0x18] sm:$0xff]
        %v417 = vld [vmem:[#allocation5 + $0x20] sm:$0xff]
        %v418 = vld [vmem:[#allocation5 + $0x28] sm:$0xff]
        %v419 = vld [vmem:[#allocation5 + $0x30] sm:$0xff]
        %v420 = vld [vmem:[#allocation5 + $0x38] sm:$0xff]
        %v421 = vld [vmem:[#allocation5 + $0x40] sm:$0xff]
        %v422 = vld [vmem:[#allocation5 + $0x48] sm:$0xff]
        %v423 = vld [vmem:[#allocation5 + $0x50] sm:$0xff]
        %v424 = vld [vmem:[#allocation5 + $0x58] sm:$0xff]
        %v425 = vld [vmem:[#allocation5 + $0x60] sm:$0xff]
        %v426 = vld [vmem:[#allocation5 + $0x68] sm:$0xff]
        %v427 = vld [vmem:[#allocation5 + $0x70] sm:$0xff]
        %v428 = vld [vmem:[#allocation5 + $0x78] sm:$0xff]
        %v429 = vld [vmem:[%s317] sm:$0x1]
        %v431 = vlaneseq
        %v432 = vshrl.u32 %v431, 7
        %v433 = vsub.s32 0, %v432
        %v434 = vrot.slane %v429, %v433
        %436 = vmatprep.subr.mxu0 0.0
        %437 = vmatpush1.msra.mxu0 %v428
        %438 = vmatprep.subr.mxu0 0.0
        %439 = vmatpush1.msra.mxu0 %v427
        %440 = vmatprep.subr.mxu0 0.0
        %441 = vmatpush1.msra.mxu0 %v426
        %442 = vmatprep.subr.mxu0 0.0
        %443 = vmatpush1.msra.mxu0 %v425
        %444 = vmatprep.subr.mxu0 0.0
        %445 = vmatpush1.msra.mxu0 %v424
        %446 = vmatprep.subr.mxu0 0.0
        %447 = vmatpush1.msra.mxu0 %v423
        %448 = vmatprep.subr.mxu0 0.0
        %449 = vmatpush1.msra.mxu0 %v422
        %450 = vmatprep.subr.mxu0 0.0
        %451 = vmatpush1.msra.mxu0 %v421
        %452 = vmatprep.subr.mxu0 0.0
        %453 = vmatpush1.msra.mxu0 %v420
        %454 = vmatprep.subr.mxu0 0.0
        %455 = vmatpush1.msra.mxu0 %v419
        %456 = vmatprep.subr.mxu0 0.0
        %457 = vmatpush1.msra.mxu0 %v418
        %458 = vmatprep.subr.mxu0 0.0
        %459 = vmatpush1.msra.mxu0 %v417
        %460 = vmatprep.subr.mxu0 0.0
        %461 = vmatpush1.msra.mxu0 %v416
        %462 = vmatprep.subr.mxu0 0.0
        %463 = vmatpush1.msra.mxu0 %v415
        %464 = vmatprep.subr.mxu0 0.0
        %465 = vmatpush1.msra.mxu0 %v414
        %466 = vmatprep.subr.mxu0 0.0
        %467 = vmatpush1.msra.mxu0 %v413
        %468 = vmatprep.subr.mxu0 0.0
        %469 = vmatpush2.msra.mxu0 0.0
        %470 = vmatprep.subr.mxu0 0.0
        %471 = vmatpush2.msra.mxu0 0.0
        %472 = vmatprep.subr.mxu0 0.0
        %473 = vmatpush2.msra.mxu0 0.0
        %474 = vmatprep.subr.mxu0 0.0
        %475 = vmatpush2.msra.mxu0 0.0
        %476 = vmatprep.subr.mxu0 0.0
        %477 = vmatpush2.msra.mxu0 0.0
        %478 = vmatprep.subr.mxu0 0.0
        %479 = vmatpush2.msra.mxu0 0.0
        %480 = vmatprep.subr.mxu0 0.0
        %481 = vmatpush2.msra.mxu0 0.0
        %482 = vmatprep.subr.mxu0 0.0
        %483 = vmatpush2.msra.mxu0 0.0
        %484 = vmatprep.subr.mxu0 0.0
        %485 = vmatpush2.msra.mxu0 0.0
        %486 = vmatprep.subr.mxu0 0.0
        %487 = vmatpush2.msra.mxu0 0.0
        %488 = vmatprep.subr.mxu0 0.0
        %489 = vmatpush2.msra.mxu0 0.0
        %490 = vmatprep.subr.mxu0 0.0
        %491 = vmatpush2.msra.mxu0 0.0
        %492 = vmatprep.subr.mxu0 0.0
        %493 = vmatpush2.msra.mxu0 0.0
        %494 = vmatprep.subr.mxu0 0.0
        %495 = vmatpush2.msra.mxu0 0.0
        %496 = vmatprep.subr.mxu0 0.0
        %497 = vmatpush2.msra.mxu0 0.0
        %498 = vmatprep.subr.mxu0 0.0
        %499 = vmatpush2.msra.mxu0 0.0
        %500 = vmatprep.mubr.f32.mxu0 0.0
        %501 = vmatmul.mubr.f32.gmra.mxu0 %v412
        %v502 = vpop.f32.mrf.mxu0
        %v503 = vadd.f32 %v434, %v502
        %v504 = vpop.f32.mrf.mxu0
        %505 = vdwg.mxu0
        %506 = vst [vmem:[%s306] sm:$0xff] %v503
        %s507 = sand.u32 %s182, 1
        %s508 = scalar_lea.sflag [#allocation4], %s507
        %s509 = sand.u32 %s182, 1
        %s510 = smul.addr %s509, 8
        %s511 = scalar_lea.vmem [#allocation7], %s510
        // Predicated region
        $region49: #{expert_forward_padded.1} parent=39 // pred_check
          %p512 = pneg %p192
        $region50: #{expert_forward_padded.1} parent=39 // pred_check_branch
          %514 = sbr.rel (%p512) target = $region52
        $region51: #{expert_forward_padded.1} parent=39 // pred_region
          %s516 = ssub.s32 128, 128
          %517 = vsyncadd %s508, %s516
          %s518 = sadd.s32 %s27, %s26
          %s519 = smul.addr %s518, 128
          %s520 = scalar_lea.hbm %s5, %s519
          %s522 = sshll.u32 %s511, 4
          %s523 = int_to_ptr.vmem [resolvable:$true] %s522
          %525 = dma.vmem_to_hbm [thread:$0]  %s523, 128, %s520, %s508
        $region52: #{expert_forward_padded.1} parent=39 // pred_fallthru
          _
      $region40: #{expert_forward_padded.1} parent=5 // pred_fallthru
        _
      %p526 = scmp.le.s32.totalorder 2, %s16
      // Predicated region
      $region53: #{expert_forward_padded.1} parent=5 // pred_check
        %p527 = pneg %p526
      $region54: #{expert_forward_padded.1} parent=5 // pred_check_branch
        %529 = sbr.rel (%p527) target = $region56
      $region55: #{expert_forward_padded.1} parent=5 // pred_region
        %s530 = ssub.s32 %s16, 2
        // Predicated region
        $region57: #{expert_forward_padded.1} parent=55 // pred_check
          %p531 = pneg %p198
        $region58: #{expert_forward_padded.1} parent=55 // pred_check_branch
          %533 = sbr.rel (%p531) target = $region60
        $region59: #{expert_forward_padded.1} parent=55 // pred_region
          %s534 = sand.u32 %s183, 1
          %s535 = scalar_lea.sflag [#allocation4], %s534
          %s536 = sand.u32 %s183, 1
          %s537 = smul.addr %s536, 8
          %s538 = scalar_lea.vmem [#allocation7], %s537
          %539 = dma.done %s535, 128
        $region60: #{expert_forward_padded.1} parent=55 // pred_fallthru
          _
      $region56: #{expert_forward_padded.1} parent=5 // pred_fallthru
        _
    $region6: #{expert_forward_padded.1} parent=1 // loop_footer
      %s20 = sadd.s32 1, %s16
    $region7: #{expert_forward_padded.1} parent=1 // loop_footer_branch
      %15 = sbr.rel target = $region3
    $region8: #{expert_forward_padded.1} parent=1 // loop_exit
      _
    %540 = vsyncpa [#allocation3], 1
    %s541 = scalar_lea.sflag [#allocation3], 1
    %542 = vsyncpa %s541, 1
    %543 = vsyncpa [#allocation6], 1
    %544 = vsyncpa [#allocation4], 1
    %s545 = scalar_lea.sflag [#allocation4], 1
    %546 = vsyncpa %s545, 1

</llo_original>
